<compile_context>
chip_gen: v6e
topology: v6e:2x2x1
jax: 0.10.0
libtpu: 0.0.40
codegen_flags: <defaults>
</compile_context>

<pallas_src>
import functools

import jax
import jax.numpy as jnp
from jax import lax
from jax.experimental import pallas as pl
from jax.experimental.pallas import tpu as pltpu


# ---------------------------------------------------------------------------
# Kernel 1: per-mode complex channel mixing (the "complex_matmul_2d" hot path)
# ---------------------------------------------------------------------------
def _spectral_mix_kernel(xr_ref, xi_ref, wr_ref, wi_ref, or_ref, oi_ref, *, B, I, O):
    # xr/xi : (B*I, T)  real/imag of x_ft corner blocks; both corners packed on lanes.
    # wr/wi : (I*O, T)  real/imag of the packed Fourier weights.
    # or/oi : (B*O, T)  real/imag of the packed out_ft corner blocks.
    #
    # out[b*O + o, t] = sum_i  xr[b*I+i, t]*wr[i*O+o, t] - xi[b*I+i, t]*wi[i*O+o, t]
    # (and the matching imaginary part).  Per (b, i) we broadcast one x row over the
    # O weight rows so every VPU op works on a lane-dense (O, T) tile.
    for b in range(B):
        acc_r = None
        acc_i = None
        for i in range(I):
            xr_i = xr_ref[pl.ds(b * I + i, 1), :]      # (1, T) -> broadcasts over O rows
            xi_i = xi_ref[pl.ds(b * I + i, 1), :]
            wr_i = wr_ref[pl.ds(i * O, O), :]          # (O, T)
            wi_i = wi_ref[pl.ds(i * O, O), :]
            pr = xr_i * wr_i - xi_i * wi_i             # (O, T)
            pi = xi_i * wr_i + xr_i * wi_i
            acc_r = pr if acc_r is None else acc_r + pr
            acc_i = pi if acc_i is None else acc_i + pi
        or_ref[pl.ds(b * O, O), :] = acc_r
        oi_ref[pl.ds(b * O, O), :] = acc_i


def spectral_mix(xr, xi, wr, wi, B, I, O):
    # xr/xi: (B*I, 2L); wr/wi: (I*O, 2L)  ->  (out_r, out_i) each (B*O, 2L)
    two_l = xr.shape[-1]
    # 128-lane tiles over the packed mode axis: lane-dense blocks, bounded per-step
    # VMEM, and >= 2 parallel grid steps (v7x dual TensorCore) once 2L > 128.
    t_lane = 128 if two_l % 128 == 0 else two_l
    grid = (two_l // t_lane,)
    kernel = functools.partial(_spectral_mix_kernel, B=B, I=I, O=O)
    return pl.pallas_call(
        kernel,
        out_shape=(jax.ShapeDtypeStruct((B * O, two_l), jnp.float32),
                   jax.ShapeDtypeStruct((B * O, two_l), jnp.float32)),
        grid=grid,
        in_specs=[
            pl.BlockSpec((B * I, t_lane), lambda t: (0, t)),
            pl.BlockSpec((B * I, t_lane), lambda t: (0, t)),
            pl.BlockSpec((I * O, t_lane), lambda t: (0, t)),
            pl.BlockSpec((I * O, t_lane), lambda t: (0, t)),
        ],
        out_specs=(
            pl.BlockSpec((B * O, t_lane), lambda t: (0, t)),
            pl.BlockSpec((B * O, t_lane), lambda t: (0, t)),
        ),
        compiler_params=pltpu.CompilerParams(dimension_semantics=("parallel",)),
    )(xr, xi, wr, wi)


# ---------------------------------------------------------------------------
# Kernel 2: fused residual Linear + add + ReLU (channels-first, spatial on lanes)
# ---------------------------------------------------------------------------
def _residual_relu_kernel(w_ref, x_ref, y_ref, o_ref):
    # w: (O, I)  transposed Linear weight
    # x: (I, S)  channels-first input for one batch element, spatial flattened on lanes
    # y: (O, S)  spectral (irfft) branch with the bias already folded in
    # o: (O, S)
    res = jnp.dot(w_ref[...], x_ref[...], preferred_element_type=jnp.float32)
    o_ref[...] = jnp.maximum(y_ref[...] + res, 0.0).astype(o_ref.dtype)


def residual_relu(w_t, x_cf, y_cf):
    B, I, S = x_cf.shape
    O = w_t.shape[0]
    return pl.pallas_call(
        _residual_relu_kernel,
        out_shape=jax.ShapeDtypeStruct((B, O, S), jnp.float32),
        grid=(B,),
        in_specs=[
            pl.BlockSpec((O, I), lambda b: (0, 0)),
            pl.BlockSpec((None, I, S), lambda b: (b, 0, 0)),
            pl.BlockSpec((None, O, S), lambda b: (b, 0, 0)),
        ],
        out_specs=pl.BlockSpec((None, O, S), lambda b: (b, 0, 0)),
        compiler_params=pltpu.CompilerParams(dimension_semantics=("parallel",)),
    )(w_t, x_cf, y_cf)


# ---------------------------------------------------------------------------
# Full forward (FFT glue in plain JAX, hot paths in Pallas)
# ---------------------------------------------------------------------------
def spectral_conv2d_forward(x, fourier_weight, W, b, n_modes):
    B, M, N, I = x.shape
    O = W.shape[1]
    nm = n_modes
    L = nm * nm
    # The PyTorch module's out_ft / irfft2 axis handling only round-trips for square
    # inputs (it swaps the spatial axes of the spectral branch); we mirror it exactly.
    assert M == N

    # ---- spectral branch ----
    xp = jnp.transpose(x, (0, 3, 1, 2))                        # (B, I, M, N)
    x_ft = jnp.fft.rfft2(xp, s=(M, N), norm="ortho")           # (B, I, M, N//2+1) complex64
    low = x_ft[:, :, :nm, :nm]
    high = x_ft[:, :, M - nm:, :nm]
    corners = jnp.stack([low, high], axis=2)                   # (B, I, 2, nm, nm)
    xr = jnp.real(corners).reshape(B * I, 2 * L).astype(jnp.float32)
    xi = jnp.imag(corners).reshape(B * I, 2 * L).astype(jnp.float32)
    # fourier_weight: (2, I, O, nm, nm, 2) -> pack the 2 corner blocks onto lanes.
    wr = jnp.transpose(fourier_weight[..., 0], (1, 2, 0, 3, 4)).reshape(I * O, 2 * L)
    wi = jnp.transpose(fourier_weight[..., 1], (1, 2, 0, 3, 4)).reshape(I * O, 2 * L)

    out_r, out_i = spectral_mix(xr, xi, wr.astype(jnp.float32),
                                wi.astype(jnp.float32), B, I, O)   # (B*O, 2L) each
    o_c = (out_r + 1j * out_i).reshape(B, O, 2, nm, nm).astype(jnp.complex64)

    out_ft = jnp.zeros((B, O, N, M // 2 + 1), jnp.complex64)
    out_ft = out_ft.at[:, :, :nm, :nm].set(o_c[:, :, 0])
    out_ft = out_ft.at[:, :, N - nm:, :nm].set(o_c[:, :, 1])
    xs = jnp.fft.irfft2(out_ft, s=(N, M), norm="ortho")        # (B, O, N, M)

    # ---- fused residual Linear + add + ReLU (Pallas, channels-first) ----
    x_cf = xp.reshape(B, I, M * N).astype(jnp.float32)
    y_cf = xs.reshape(B, O, N * M).astype(jnp.float32) + b.astype(jnp.float32)[None, :, None]
    out_cf = residual_relu(jnp.transpose(W, (1, 0)), x_cf, y_cf)    # (B, O, M*N)
    return jnp.transpose(out_cf.reshape(B, O, N, M), (0, 2, 3, 1))  # (B, M, N, O)


# ---------------------------------------------------------------------------
# Pure-JAX reference (mirrors the PyTorch forward)
# ---------------------------------------------------------------------------
def reference_forward(x, fw, W, b, nm):
    B, M, N, I = x.shape
    O = W.shape[1]
    res = jnp.dot(x.reshape(-1, I), W,
                  precision=lax.Precision.HIGHEST).reshape(B, M, N, O) + b
    xp = jnp.transpose(x, (0, 3, 1, 2))
    x_ft = jnp.fft.rfft2(xp, s=(M, N), norm="ortho")
    w_c = (fw[..., 0] + 1j * fw[..., 1]).astype(jnp.complex64)      # (2, I, O, nm, nm)
    lo = jnp.sum(x_ft[:, :, :nm, :nm][:, :, None] * w_c[0][None], axis=1)
    hi = jnp.sum(x_ft[:, :, M - nm:, :nm][:, :, None] * w_c[1][None], axis=1)
    out_ft = jnp.zeros((B, O, N, M // 2 + 1), jnp.complex64)
    out_ft = out_ft.at[:, :, :nm, :nm].set(lo)
    out_ft = out_ft.at[:, :, N - nm:, :nm].set(hi)
    xs = jnp.fft.irfft2(out_ft, s=(N, M), norm="ortho")
    xs = jnp.transpose(xs, (0, 2, 3, 1))
    return jnp.maximum(xs + res, 0.0)


if __name__ == "__main__":
    B, M, N = 2, 16, 16
    in_dim, out_dim, n_modes = 4, 4, 8

    key = jax.random.PRNGKey(0)
    k1, k2, k3, k4 = jax.random.split(key, 4)

    # Deterministic parameter init (shapes from the module's __init__).
    # nn.Linear(in_dim, out_dim): weight stored here directly as (in_dim, out_dim).
    W = (jax.random.normal(k1, (in_dim, out_dim), jnp.float32) / jnp.sqrt(in_dim)).astype(jnp.float32)
    b = 0.01 * jax.random.normal(k2, (out_dim,), jnp.float32)
    # fourier_weight: 2 x (in_dim, out_dim, n_modes, n_modes, 2), xavier_normal with
    # gain = 1 / (in_dim * out_dim)  ->  std = gain * sqrt(2 / (fan_in + fan_out))
    fan_in = out_dim * n_modes * n_modes * 2
    fan_out = in_dim * n_modes * n_modes * 2
    std = (1.0 / (in_dim * out_dim)) * (2.0 / (fan_in + fan_out)) ** 0.5
    fw = std * jax.random.normal(k3, (2, in_dim, out_dim, n_modes, n_modes, 2), jnp.float32)

    x = jax.random.normal(k4, (B, M, N, in_dim), jnp.float32)

    fwd = jax.jit(functools.partial(spectral_conv2d_forward, n_modes=n_modes))
    out = fwd(x, fw, W, b)
    out = jax.block_until_ready(out)

    ref = reference_forward(x, fw, W, b, n_modes)
    assert out.shape == (B, M, N, out_dim)
    assert jnp.allclose(out, ref, atol=1e-4, rtol=1e-4), float(jnp.max(jnp.abs(out - ref)))

    print("KERNEL_OK")
</pallas_src>

<mosaic_0001>
module attributes {stable_mosaic.version = 11 : i64} {
  func.func @_spectral_mix_kernel(%arg0: i32, %arg1: memref<8x128xf32, #tpu.memory_space<vmem>>, %arg2: memref<8x128xf32, #tpu.memory_space<vmem>>, %arg3: memref<16x128xf32, #tpu.memory_space<vmem>>, %arg4: memref<16x128xf32, #tpu.memory_space<vmem>>, %arg5: memref<8x128xf32, #tpu.memory_space<vmem>>, %arg6: memref<8x128xf32, #tpu.memory_space<vmem>>) attributes {dimension_semantics = [#tpu.dimension_semantics<parallel>], iteration_bounds = array<i64: 1>, scalar_prefetch = 0 : i64, scratch_operands = 0 : i64, tpu.core_type = #tpu.core_type<tc>, window_params = [{transform_indices = @transform_0, window_bounds = array<i64: 8, 128>}, {transform_indices = @transform_1, window_bounds = array<i64: 8, 128>}, {transform_indices = @transform_2, window_bounds = array<i64: 16, 128>}, {transform_indices = @transform_3, window_bounds = array<i64: 16, 128>}, {transform_indices = @transform_4, window_bounds = array<i64: 8, 128>}, {transform_indices = @transform_5, window_bounds = array<i64: 8, 128>}]} {
    %c0 = arith.constant 0 : index
    %c0_0 = arith.constant 0 : index
    %0 = vector.load %arg1[%c0, %c0_0] : memref<8x128xf32, #tpu.memory_space<vmem>>, vector<1x128xf32>
    %c0_1 = arith.constant 0 : index
    %c0_2 = arith.constant 0 : index
    %1 = vector.load %arg2[%c0_1, %c0_2] : memref<8x128xf32, #tpu.memory_space<vmem>>, vector<1x128xf32>
    %c0_3 = arith.constant 0 : index
    %c0_4 = arith.constant 0 : index
    %2 = vector.load %arg3[%c0_3, %c0_4] : memref<16x128xf32, #tpu.memory_space<vmem>>, vector<4x128xf32>
    %c0_5 = arith.constant 0 : index
    %c0_6 = arith.constant 0 : index
    %3 = vector.load %arg4[%c0_5, %c0_6] : memref<16x128xf32, #tpu.memory_space<vmem>>, vector<4x128xf32>
    %4 = vector.broadcast %0 : vector<1x128xf32> to vector<4x128xf32>
    %5 = arith.mulf %4, %2 : vector<4x128xf32>
    %6 = vector.broadcast %1 : vector<1x128xf32> to vector<4x128xf32>
    %7 = arith.mulf %6, %3 : vector<4x128xf32>
    %8 = arith.subf %5, %7 : vector<4x128xf32>
    %9 = vector.broadcast %1 : vector<1x128xf32> to vector<4x128xf32>
    %10 = arith.mulf %9, %2 : vector<4x128xf32>
    %11 = vector.broadcast %0 : vector<1x128xf32> to vector<4x128xf32>
    %12 = arith.mulf %11, %3 : vector<4x128xf32>
    %13 = arith.addf %10, %12 : vector<4x128xf32>
    %c1 = arith.constant 1 : index
    %c0_7 = arith.constant 0 : index
    %14 = vector.load %arg1[%c1, %c0_7] : memref<8x128xf32, #tpu.memory_space<vmem>>, vector<1x128xf32>
    %c1_8 = arith.constant 1 : index
    %c0_9 = arith.constant 0 : index
    %15 = vector.load %arg2[%c1_8, %c0_9] : memref<8x128xf32, #tpu.memory_space<vmem>>, vector<1x128xf32>
    %c4 = arith.constant 4 : index
    %c0_10 = arith.constant 0 : index
    %16 = vector.load %arg3[%c4, %c0_10] : memref<16x128xf32, #tpu.memory_space<vmem>>, vector<4x128xf32>
    %c4_11 = arith.constant 4 : index
    %c0_12 = arith.constant 0 : index
    %17 = vector.load %arg4[%c4_11, %c0_12] : memref<16x128xf32, #tpu.memory_space<vmem>>, vector<4x128xf32>
    %18 = vector.broadcast %14 : vector<1x128xf32> to vector<4x128xf32>
    %19 = arith.mulf %18, %16 : vector<4x128xf32>
    %20 = vector.broadcast %15 : vector<1x128xf32> to vector<4x128xf32>
    %21 = arith.mulf %20, %17 : vector<4x128xf32>
    %22 = arith.subf %19, %21 : vector<4x128xf32>
    %23 = vector.broadcast %15 : vector<1x128xf32> to vector<4x128xf32>
    %24 = arith.mulf %23, %16 : vector<4x128xf32>
    %25 = vector.broadcast %14 : vector<1x128xf32> to vector<4x128xf32>
    %26 = arith.mulf %25, %17 : vector<4x128xf32>
    %27 = arith.addf %24, %26 : vector<4x128xf32>
    %28 = arith.addf %8, %22 : vector<4x128xf32>
    %29 = arith.addf %13, %27 : vector<4x128xf32>
    %c2 = arith.constant 2 : index
    %c0_13 = arith.constant 0 : index
    %30 = vector.load %arg1[%c2, %c0_13] : memref<8x128xf32, #tpu.memory_space<vmem>>, vector<1x128xf32>
    %c2_14 = arith.constant 2 : index
    %c0_15 = arith.constant 0 : index
    %31 = vector.load %arg2[%c2_14, %c0_15] : memref<8x128xf32, #tpu.memory_space<vmem>>, vector<1x128xf32>
    %c8 = arith.constant 8 : index
    %c0_16 = arith.constant 0 : index
    %32 = vector.load %arg3[%c8, %c0_16] : memref<16x128xf32, #tpu.memory_space<vmem>>, vector<4x128xf32>
    %c8_17 = arith.constant 8 : index
    %c0_18 = arith.constant 0 : index
    %33 = vector.load %arg4[%c8_17, %c0_18] : memref<16x128xf32, #tpu.memory_space<vmem>>, vector<4x128xf32>
    %34 = vector.broadcast %30 : vector<1x128xf32> to vector<4x128xf32>
    %35 = arith.mulf %34, %32 : vector<4x128xf32>
    %36 = vector.broadcast %31 : vector<1x128xf32> to vector<4x128xf32>
    %37 = arith.mulf %36, %33 : vector<4x128xf32>
    %38 = arith.subf %35, %37 : vector<4x128xf32>
    %39 = vector.broadcast %31 : vector<1x128xf32> to vector<4x128xf32>
    %40 = arith.mulf %39, %32 : vector<4x128xf32>
    %41 = vector.broadcast %30 : vector<1x128xf32> to vector<4x128xf32>
    %42 = arith.mulf %41, %33 : vector<4x128xf32>
    %43 = arith.addf %40, %42 : vector<4x128xf32>
    %44 = arith.addf %28, %38 : vector<4x128xf32>
    %45 = arith.addf %29, %43 : vector<4x128xf32>
    %c3 = arith.constant 3 : index
    %c0_19 = arith.constant 0 : index
    %46 = vector.load %arg1[%c3, %c0_19] : memref<8x128xf32, #tpu.memory_space<vmem>>, vector<1x128xf32>
    %c3_20 = arith.constant 3 : index
    %c0_21 = arith.constant 0 : index
    %47 = vector.load %arg2[%c3_20, %c0_21] : memref<8x128xf32, #tpu.memory_space<vmem>>, vector<1x128xf32>
    %c12 = arith.constant 12 : index
    %c0_22 = arith.constant 0 : index
    %48 = vector.load %arg3[%c12, %c0_22] : memref<16x128xf32, #tpu.memory_space<vmem>>, vector<4x128xf32>
    %c12_23 = arith.constant 12 : index
    %c0_24 = arith.constant 0 : index
    %49 = vector.load %arg4[%c12_23, %c0_24] : memref<16x128xf32, #tpu.memory_space<vmem>>, vector<4x128xf32>
    %50 = vector.broadcast %46 : vector<1x128xf32> to vector<4x128xf32>
    %51 = arith.mulf %50, %48 : vector<4x128xf32>
    %52 = vector.broadcast %47 : vector<1x128xf32> to vector<4x128xf32>
    %53 = arith.mulf %52, %49 : vector<4x128xf32>
    %54 = arith.subf %51, %53 : vector<4x128xf32>
    %55 = vector.broadcast %47 : vector<1x128xf32> to vector<4x128xf32>
    %56 = arith.mulf %55, %48 : vector<4x128xf32>
    %57 = vector.broadcast %46 : vector<1x128xf32> to vector<4x128xf32>
    %58 = arith.mulf %57, %49 : vector<4x128xf32>
    %59 = arith.addf %56, %58 : vector<4x128xf32>
    %60 = arith.addf %44, %54 : vector<4x128xf32>
    %61 = arith.addf %45, %59 : vector<4x128xf32>
    %c0_25 = arith.constant 0 : index
    %c0_26 = arith.constant 0 : index
    %62 = vector.load %arg5[%c0_25, %c0_26] : memref<8x128xf32, #tpu.memory_space<vmem>>, vector<4x128xf32>
    tpu.vector_store %arg5[%c0_25, %c0_26], %60 {strides = array<i32>} : memref<8x128xf32, #tpu.memory_space<vmem>>, vector<4x128xf32>,
    %c0_27 = arith.constant 0 : index
    %c0_28 = arith.constant 0 : index
    %63 = vector.load %arg6[%c0_27, %c0_28] : memref<8x128xf32, #tpu.memory_space<vmem>>, vector<4x128xf32>
    tpu.vector_store %arg6[%c0_27, %c0_28], %61 {strides = array<i32>} : memref<8x128xf32, #tpu.memory_space<vmem>>, vector<4x128xf32>,
    %c4_29 = arith.constant 4 : index
    %c0_30 = arith.constant 0 : index
    %64 = vector.load %arg1[%c4_29, %c0_30] : memref<8x128xf32, #tpu.memory_space<vmem>>, vector<1x128xf32>
    %c4_31 = arith.constant 4 : index
    %c0_32 = arith.constant 0 : index
    %65 = vector.load %arg2[%c4_31, %c0_32] : memref<8x128xf32, #tpu.memory_space<vmem>>, vector<1x128xf32>
    %c0_33 = arith.constant 0 : index
    %c0_34 = arith.constant 0 : index
    %66 = vector.load %arg3[%c0_33, %c0_34] : memref<16x128xf32, #tpu.memory_space<vmem>>, vector<4x128xf32>
    %c0_35 = arith.constant 0 : index
    %c0_36 = arith.constant 0 : index
    %67 = vector.load %arg4[%c0_35, %c0_36] : memref<16x128xf32, #tpu.memory_space<vmem>>, vector<4x128xf32>
    %68 = vector.broadcast %64 : vector<1x128xf32> to vector<4x128xf32>
    %69 = arith.mulf %68, %66 : vector<4x128xf32>
    %70 = vector.broadcast %65 : vector<1x128xf32> to vector<4x128xf32>
    %71 = arith.mulf %70, %67 : vector<4x128xf32>
    %72 = arith.subf %69, %71 : vector<4x128xf32>
    %73 = vector.broadcast %65 : vector<1x128xf32> to vector<4x128xf32>
    %74 = arith.mulf %73, %66 : vector<4x128xf32>
    %75 = vector.broadcast %64 : vector<1x128xf32> to vector<4x128xf32>
    %76 = arith.mulf %75, %67 : vector<4x128xf32>
    %77 = arith.addf %74, %76 : vector<4x128xf32>
    %c5 = arith.constant 5 : index
    %c0_37 = arith.constant 0 : index
    %78 = vector.load %arg1[%c5, %c0_37] : memref<8x128xf32, #tpu.memory_space<vmem>>, vector<1x128xf32>
    %c5_38 = arith.constant 5 : index
    %c0_39 = arith.constant 0 : index
    %79 = vector.load %arg2[%c5_38, %c0_39] : memref<8x128xf32, #tpu.memory_space<vmem>>, vector<1x128xf32>
    %c4_40 = arith.constant 4 : index
    %c0_41 = arith.constant 0 : index
    %80 = vector.load %arg3[%c4_40, %c0_41] : memref<16x128xf32, #tpu.memory_space<vmem>>, vector<4x128xf32>
    %c4_42 = arith.constant 4 : index
    %c0_43 = arith.constant 0 : index
    %81 = vector.load %arg4[%c4_42, %c0_43] : memref<16x128xf32, #tpu.memory_space<vmem>>, vector<4x128xf32>
    %82 = vector.broadcast %78 : vector<1x128xf32> to vector<4x128xf32>
    %83 = arith.mulf %82, %80 : vector<4x128xf32>
    %84 = vector.broadcast %79 : vector<1x128xf32> to vector<4x128xf32>
    %85 = arith.mulf %84, %81 : vector<4x128xf32>
    %86 = arith.subf %83, %85 : vector<4x128xf32>
    %87 = vector.broadcast %79 : vector<1x128xf32> to vector<4x128xf32>
    %88 = arith.mulf %87, %80 : vector<4x128xf32>
    %89 = vector.broadcast %78 : vector<1x128xf32> to vector<4x128xf32>
    %90 = arith.mulf %89, %81 : vector<4x128xf32>
    %91 = arith.addf %88, %90 : vector<4x128xf32>
    %92 = arith.addf %72, %86 : vector<4x128xf32>
    %93 = arith.addf %77, %91 : vector<4x128xf32>
    %c6 = arith.constant 6 : index
    %c0_44 = arith.constant 0 : index
    %94 = vector.load %arg1[%c6, %c0_44] : memref<8x128xf32, #tpu.memory_space<vmem>>, vector<1x128xf32>
    %c6_45 = arith.constant 6 : index
    %c0_46 = arith.constant 0 : index
    %95 = vector.load %arg2[%c6_45, %c0_46] : memref<8x128xf32, #tpu.memory_space<vmem>>, vector<1x128xf32>
    %c8_47 = arith.constant 8 : index
    %c0_48 = arith.constant 0 : index
    %96 = vector.load %arg3[%c8_47, %c0_48] : memref<16x128xf32, #tpu.memory_space<vmem>>, vector<4x128xf32>
    %c8_49 = arith.constant 8 : index
    %c0_50 = arith.constant 0 : index
    %97 = vector.load %arg4[%c8_49, %c0_50] : memref<16x128xf32, #tpu.memory_space<vmem>>, vector<4x128xf32>
    %98 = vector.broadcast %94 : vector<1x128xf32> to vector<4x128xf32>
    %99 = arith.mulf %98, %96 : vector<4x128xf32>
    %100 = vector.broadcast %95 : vector<1x128xf32> to vector<4x128xf32>
    %101 = arith.mulf %100, %97 : vector<4x128xf32>
    %102 = arith.subf %99, %101 : vector<4x128xf32>
    %103 = vector.broadcast %95 : vector<1x128xf32> to vector<4x128xf32>
    %104 = arith.mulf %103, %96 : vector<4x128xf32>
    %105 = vector.broadcast %94 : vector<1x128xf32> to vector<4x128xf32>
    %106 = arith.mulf %105, %97 : vector<4x128xf32>
    %107 = arith.addf %104, %106 : vector<4x128xf32>
    %108 = arith.addf %92, %102 : vector<4x128xf32>
    %109 = arith.addf %93, %107 : vector<4x128xf32>
    %c7 = arith.constant 7 : index
    %c0_51 = arith.constant 0 : index
    %110 = vector.load %arg1[%c7, %c0_51] : memref<8x128xf32, #tpu.memory_space<vmem>>, vector<1x128xf32>
    %c7_52 = arith.constant 7 : index
    %c0_53 = arith.constant 0 : index
    %111 = vector.load %arg2[%c7_52, %c0_53] : memref<8x128xf32, #tpu.memory_space<vmem>>, vector<1x128xf32>
    %c12_54 = arith.constant 12 : index
    %c0_55 = arith.constant 0 : index
    %112 = vector.load %arg3[%c12_54, %c0_55] : memref<16x128xf32, #tpu.memory_space<vmem>>, vector<4x128xf32>
    %c12_56 = arith.constant 12 : index
    %c0_57 = arith.constant 0 : index
    %113 = vector.load %arg4[%c12_56, %c0_57] : memref<16x128xf32, #tpu.memory_space<vmem>>, vector<4x128xf32>
    %114 = vector.broadcast %110 : vector<1x128xf32> to vector<4x128xf32>
    %115 = arith.mulf %114, %112 : vector<4x128xf32>
    %116 = vector.broadcast %111 : vector<1x128xf32> to vector<4x128xf32>
    %117 = arith.mulf %116, %113 : vector<4x128xf32>
    %118 = arith.subf %115, %117 : vector<4x128xf32>
    %119 = vector.broadcast %111 : vector<1x128xf32> to vector<4x128xf32>
    %120 = arith.mulf %119, %112 : vector<4x128xf32>
    %121 = vector.broadcast %110 : vector<1x128xf32> to vector<4x128xf32>
    %122 = arith.mulf %121, %113 : vector<4x128xf32>
    %123 = arith.addf %120, %122 : vector<4x128xf32>
    %124 = arith.addf %108, %118 : vector<4x128xf32>
    %125 = arith.addf %109, %123 : vector<4x128xf32>
    %c4_58 = arith.constant 4 : index
    %c0_59 = arith.constant 0 : index
    %126 = vector.load %arg5[%c4_58, %c0_59] : memref<8x128xf32, #tpu.memory_space<vmem>>, vector<4x128xf32>
    tpu.vector_store %arg5[%c4_58, %c0_59], %124 {strides = array<i32>} : memref<8x128xf32, #tpu.memory_space<vmem>>, vector<4x128xf32>,
    %c4_60 = arith.constant 4 : index
    %c0_61 = arith.constant 0 : index
    %127 = vector.load %arg6[%c4_60, %c0_61] : memref<8x128xf32, #tpu.memory_space<vmem>>, vector<4x128xf32>
    tpu.vector_store %arg6[%c4_60, %c0_61], %125 {strides = array<i32>} : memref<8x128xf32, #tpu.memory_space<vmem>>, vector<4x128xf32>,
    return
  }
  func.func @transform_0(%arg0: i32) -> (i32, i32) {
    %c0_i32 = arith.constant 0 : i32
    %c0_i32_0 = arith.constant 0 : i32
    return %c0_i32, %arg0 : i32, i32
  }
  func.func @transform_1(%arg0: i32) -> (i32, i32) {
    %c0_i32 = arith.constant 0 : i32
    %c0_i32_0 = arith.constant 0 : i32
    return %c0_i32, %arg0 : i32, i32
  }
  func.func @transform_2(%arg0: i32) -> (i32, i32) {
    %c0_i32 = arith.constant 0 : i32
    %c0_i32_0 = arith.constant 0 : i32
    return %c0_i32, %arg0 : i32, i32
  }
  func.func @transform_3(%arg0: i32) -> (i32, i32) {
    %c0_i32 = arith.constant 0 : i32
    %c0_i32_0 = arith.constant 0 : i32
    return %c0_i32, %arg0 : i32, i32
  }
  func.func @transform_4(%arg0: i32) -> (i32, i32) {
    %c0_i32 = arith.constant 0 : i32
    %c0_i32_0 = arith.constant 0 : i32
    return %c0_i32, %arg0 : i32, i32
  }
  func.func @transform_5(%arg0: i32) -> (i32, i32) {
    %c0_i32 = arith.constant 0 : i32
    %c0_i32_0 = arith.constant 0 : i32
    return %c0_i32, %arg0 : i32, i32
  }
}

module attributes {stable_mosaic.version = 11 : i64} {
  func.func @_residual_relu_kernel(%arg0: i32, %arg1: memref<4x4xf32, #tpu.memory_space<vmem>>, %arg2: memref<1x4x256xf32, #tpu.memory_space<vmem>>, %arg3: memref<1x4x256xf32, #tpu.memory_space<vmem>>, %arg4: memref<1x4x256xf32, #tpu.memory_space<vmem>>) attributes {dimension_semantics = [#tpu.dimension_semantics<parallel>], iteration_bounds = array<i64: 2>, scalar_prefetch = 0 : i64, scratch_operands = 0 : i64, tpu.core_type = #tpu.core_type<tc>, window_params = [{pipeline_mode = #tpu.pipeline_mode<synchronous>, transform_indices = @transform_0, window_bounds = array<i64: 4, 4>}, {transform_indices = @transform_1, window_bounds = array<i64: 1, 4, 256>}, {transform_indices = @transform_2, window_bounds = array<i64: 1, 4, 256>}, {transform_indices = @transform_3, window_bounds = array<i64: 1, 4, 256>}]} {
    %c0 = arith.constant 0 : index
    %c0_0 = arith.constant 0 : index
    %0 = vector.load %arg1[%c0, %c0_0] : memref<4x4xf32, #tpu.memory_space<vmem>>, vector<4x4xf32>
    %c0_1 = arith.constant 0 : index
    %c0_2 = arith.constant 0 : index
    %c0_3 = arith.constant 0 : index
    %1 = vector.load %arg2[%c0_1, %c0_2, %c0_3] : memref<1x4x256xf32, #tpu.memory_space<vmem>>, vector<1x4x256xf32>
    %2 = vector.shape_cast %1 : vector<1x4x256xf32> to vector<4x256xf32>
    %cst = arith.constant dense<0.000000e+00> : vector<4x256xf32>
    %3 = tpu.matmul %0, %2, %cst {dimension_numbers = #tpu.dot_dimension_numbers<[1], [0], [0], [1], [0, 0, 1, 1], [], []>} : vector<4x4xf32>, vector<4x256xf32>, vector<4x256xf32> -> vector<4x256xf32>
    %c0_4 = arith.constant 0 : index
    %c0_5 = arith.constant 0 : index
    %c0_6 = arith.constant 0 : index
    %4 = vector.load %arg3[%c0_4, %c0_5, %c0_6] : memref<1x4x256xf32, #tpu.memory_space<vmem>>, vector<1x4x256xf32>
    %5 = vector.shape_cast %4 : vector<1x4x256xf32> to vector<4x256xf32>
    %6 = arith.addf %5, %3 : vector<4x256xf32>
    %cst_7 = arith.constant 0.000000e+00 : f32
    %7 = vector.broadcast %cst_7 : f32 to vector<4x256xf32>
    %8 = arith.maximumf %6, %7 : vector<4x256xf32>
    %c0_8 = arith.constant 0 : index
    %c0_9 = arith.constant 0 : index
    %c0_10 = arith.constant 0 : index
    %9 = vector.load %arg4[%c0_8, %c0_9, %c0_10] : memref<1x4x256xf32, #tpu.memory_space<vmem>>, vector<1x4x256xf32>
    %10 = vector.shape_cast %9 : vector<1x4x256xf32> to vector<4x256xf32>
    %11 = vector.shape_cast %8 : vector<4x256xf32> to vector<1x4x256xf32>
    tpu.vector_store %arg4[%c0_8, %c0_9, %c0_10], %11 {strides = array<i32>} : memref<1x4x256xf32, #tpu.memory_space<vmem>>, vector<1x4x256xf32>,
    return
  }
  func.func @transform_0(%arg0: i32) -> (i32, i32) {
    %c0_i32 = arith.constant 0 : i32
    %c0_i32_0 = arith.constant 0 : i32
    %c0_i32_1 = arith.constant 0 : i32
    return %c0_i32, %c0_i32_0 : i32, i32
  }
  func.func @transform_1(%arg0: i32) -> (i32, i32, i32) {
    %c0_i32 = arith.constant 0 : i32
    %c0_i32_0 = arith.constant 0 : i32
    %c0_i32_1 = arith.constant 0 : i32
    return %arg0, %c0_i32, %c0_i32_0 : i32, i32, i32
  }
  func.func @transform_2(%arg0: i32) -> (i32, i32, i32) {
    %c0_i32 = arith.constant 0 : i32
    %c0_i32_0 = arith.constant 0 : i32
    %c0_i32_1 = arith.constant 0 : i32
    return %arg0, %c0_i32, %c0_i32_0 : i32, i32, i32
  }
  func.func @transform_3(%arg0: i32) -> (i32, i32, i32) {
    %c0_i32 = arith.constant 0 : i32
    %c0_i32_0 = arith.constant 0 : i32
    %c0_i32_1 = arith.constant 0 : i32
    return %arg0, %c0_i32, %c0_i32_0 : i32, i32, i32
  }
}

</mosaic_0001>

<llo_original>
// kernel: reverse.0
$region0: #{reverse.0}
  %s0 = inlined_call_operand.vmem [shape: f32[2,4,16,7], index: 0, kind: input, shape index: {}]
  %s1 = inlined_call_operand.vmem [shape: f32[2,4,16,7], index: 1, kind: output, shape index: {}]
  $region1: #{reverse.0} parent=0
    #allocation0 [shape = 'u8[65536]{0}', space=vmem, size = 0x10000, scoped, tag = 'operand span for operand 0']
    #allocation1 [shape = 'u8[32768]{0}', space=vmem, size = 0x8000, scoped, tag = 'operand span for operand 1']
    %s2 = scalar_lea.vmem [#allocation0], 8
    // Predicated region
    $region2: #{reverse.0} parent=1 // pred_check
      _
    $region3: #{reverse.0} parent=1 // pred_check_branch
      %4 = sbr.rel (0) target = $region5
    $region4: #{reverse.0} parent=1 // pred_region
      // Predicated region
      $region6: #{reverse.0} parent=4 // pred_check
        _
      $region7: #{reverse.0} parent=4 // pred_check_branch
        %6 = sbr.rel (0) target = $region9
      $region8: #{reverse.0} parent=4 // pred_region
        // Predicated region
        $region21: #{reverse.0} parent=8 // pred_check
          _
        $region22: #{reverse.0} parent=8 // pred_check_branch
          %36 = sbr.rel (0) target = $region24
        $region23: #{reverse.0} parent=8 // pred_region
          loop: start=0, step=1, limit=1
          $region25: #{reverse.0} parent=23 // loop_pre_header
            _
          $region26: #{reverse.0} parent=23 // loop_header
            %s38 = sphi 0, %s42
            %p39 = scmp.ge.s32.totalorder %s38, 1
            %s43 = sphi %s0, %s0
            %s44 = sphi %s2, %s2
          $region27: #{reverse.0} parent=23 // loop_header_branch
            %41 = sbr.rel (%p39) target = $region31
          $region28: #{reverse.0} parent=23 // loop_body
            %v45 = vld [vmem:[%s43] sm:$0xff]
            %46 = vst [vmem:[%s44] sm:$0xff] %v45
            %v47 = vld [vmem:[%s43 + $0x8] sm:$0xff]
            %48 = vst [vmem:[%s44 + $0x10] sm:$0xff] %v47
            %v49 = vld [vmem:[%s43 + $0x10] sm:$0xff]
            %50 = vst [vmem:[%s44 + $0x20] sm:$0xff] %v49
            %v51 = vld [vmem:[%s43 + $0x18] sm:$0xff]
            %52 = vst [vmem:[%s44 + $0x30] sm:$0xff] %v51
            %v53 = vld [vmem:[%s43 + $0x20] sm:$0xff]
            %54 = vst [vmem:[%s44 + $0x40] sm:$0xff] %v53
            %v55 = vld [vmem:[%s43 + $0x28] sm:$0xff]
            %56 = vst [vmem:[%s44 + $0x50] sm:$0xff] %v55
            %v57 = vld [vmem:[%s43 + $0x30] sm:$0xff]
            %58 = vst [vmem:[%s44 + $0x60] sm:$0xff] %v57
            %v59 = vld [vmem:[%s43 + $0x38] sm:$0xff]
            %60 = vst [vmem:[%s44 + $0x70] sm:$0xff] %v59
          $region29: #{reverse.0} parent=23 // loop_footer
            %s42 = sadd.s32 1, %s38
          $region30: #{reverse.0} parent=23 // loop_footer_branch
            %37 = sbr.rel target = $region26
          $region31: #{reverse.0} parent=23 // loop_exit
            _
        $region24: #{reverse.0} parent=8 // pred_fallthru
          _
        // Predicated region
        $region32: #{reverse.0} parent=8 // pred_check
          _
        $region33: #{reverse.0} parent=8 // pred_check_branch
          %62 = sbr.rel target = $region35
        $region34: #{reverse.0} parent=8 // pred_region
          _
        $region35: #{reverse.0} parent=8 // pred_fallthru
          _
      $region9: #{reverse.0} parent=4 // pred_fallthru
        _
      // Predicated region
      $region10: #{reverse.0} parent=4 // pred_check
        _
      $region11: #{reverse.0} parent=4 // pred_check_branch
        %8 = sbr.rel target = $region13
      $region12: #{reverse.0} parent=4 // pred_region
        %s10 = ssub.s32 256, 1
        loop: start=0, step=1, limit=1
        $region14: #{reverse.0} parent=12 // loop_pre_header
          _
        $region15: #{reverse.0} parent=12 // loop_header
          %s12 = sphi 0, %s16
          %p13 = scmp.ge.s32.totalorder %s12, 1
          %s17 = sphi %s0, %s0
          %s18 = sphi %s2, %s2
        $region16: #{reverse.0} parent=12 // loop_header_branch
          %15 = sbr.rel (%p13) target = $region20
        $region17: #{reverse.0} parent=12 // loop_body
          %v19 = vld [vmem:[%s17] sm:%s10]
          %20 = vst [vmem:[%s18] sm:%s10] %v19
          %v21 = vld [vmem:[%s17 + $0x8] sm:%s10]
          %22 = vst [vmem:[%s18 + $0x10] sm:%s10] %v21
          %v23 = vld [vmem:[%s17 + $0x10] sm:%s10]
          %24 = vst [vmem:[%s18 + $0x20] sm:%s10] %v23
          %v25 = vld [vmem:[%s17 + $0x18] sm:%s10]
          %26 = vst [vmem:[%s18 + $0x30] sm:%s10] %v25
          %v27 = vld [vmem:[%s17 + $0x20] sm:%s10]
          %28 = vst [vmem:[%s18 + $0x40] sm:%s10] %v27
          %v29 = vld [vmem:[%s17 + $0x28] sm:%s10]
          %30 = vst [vmem:[%s18 + $0x50] sm:%s10] %v29
          %v31 = vld [vmem:[%s17 + $0x30] sm:%s10]
          %32 = vst [vmem:[%s18 + $0x60] sm:%s10] %v31
          %v33 = vld [vmem:[%s17 + $0x38] sm:%s10]
          %34 = vst [vmem:[%s18 + $0x70] sm:%s10] %v33
        $region18: #{reverse.0} parent=12 // loop_footer
          %s16 = sadd.s32 1, %s12
        $region19: #{reverse.0} parent=12 // loop_footer_branch
          %11 = sbr.rel target = $region15
        $region20: #{reverse.0} parent=12 // loop_exit
          _
      $region13: #{reverse.0} parent=4 // pred_fallthru
        _
    $region5: #{reverse.0} parent=1 // pred_fallthru
      _
    %63 = vnop
    %s64 = scalar_lea.vmem [#allocation0], 7
    %v65 = vld [vmem:[%s64] ss:$-1 sm:$0xff]
    %v66 = vrot.slane %v65, 1
    %67 = vst [vmem:[#allocation1] sm:$0xff] %v66
    %s68 = scalar_lea.vmem [#allocation0], 8
    %s69 = scalar_lea.vmem %s68, 7 [#allocation0]
    %v70 = vld [vmem:[%s69] ss:$-1 sm:$0xff]
    %v71 = vrot.slane %v70, 1
    %v72 = vlaneseq
    %v73 = vshrl.u32 %v72, 7
    %vm74 = vcmp.lt.s32.totalorder %v73, 7
    %75 = vst.msk [vmem:[#allocation1] sm:$0xff] %vm74, %v71
    %s76 = scalar_lea.vmem [#allocation1], 8
    %s77 = scalar_lea.vmem [#allocation0], 16
    %s78 = scalar_lea.vmem %s77, 7 [#allocation0]
    %v79 = vld [vmem:[%s78] ss:$-1 sm:$0xff]
    %v80 = vrot.slane %v79, 1
    %81 = vst [vmem:[%s76] sm:$0xff] %v80
    %s82 = scalar_lea.vmem %s77, 8 [#allocation0]
    %s83 = scalar_lea.vmem %s82, 7 [#allocation0]
    %v84 = vld [vmem:[%s83] ss:$-1 sm:$0xff]
    %v85 = vrot.slane %v84, 1
    %v86 = vlaneseq
    %v87 = vshrl.u32 %v86, 7
    %vm88 = vcmp.lt.s32.totalorder %v87, 7
    %89 = vst.msk [vmem:[%s76] sm:$0xff] %vm88, %v85
    %s90 = scalar_lea.vmem [#allocation1], 16
    %s91 = scalar_lea.vmem [#allocation0], 32
    %s92 = scalar_lea.vmem %s91, 7 [#allocation0]
    %v93 = vld [vmem:[%s92] ss:$-1 sm:$0xff]
    %v94 = vrot.slane %v93, 1
    %95 = vst [vmem:[%s90] sm:$0xff] %v94
    %s96 = scalar_lea.vmem %s91, 8 [#allocation0]
    %s97 = scalar_lea.vmem %s96, 7 [#allocation0]
    %v98 = vld [vmem:[%s97] ss:$-1 sm:$0xff]
    %v99 = vrot.slane %v98, 1
    %v100 = vlaneseq
    %v101 = vshrl.u32 %v100, 7
    %vm102 = vcmp.lt.s32.totalorder %v101, 7
    %103 = vst.msk [vmem:[%s90] sm:$0xff] %vm102, %v99
    %s104 = scalar_lea.vmem [#allocation1], 24
    %s105 = scalar_lea.vmem [#allocation0], 48
    %s106 = scalar_lea.vmem %s105, 7 [#allocation0]
    %v107 = vld [vmem:[%s106] ss:$-1 sm:$0xff]
    %v108 = vrot.slane %v107, 1
    %109 = vst [vmem:[%s104] sm:$0xff] %v108
    %s110 = scalar_lea.vmem %s105, 8 [#allocation0]
    %s111 = scalar_lea.vmem %s110, 7 [#allocation0]
    %v112 = vld [vmem:[%s111] ss:$-1 sm:$0xff]
    %v113 = vrot.slane %v112, 1
    %v114 = vlaneseq
    %v115 = vshrl.u32 %v114, 7
    %vm116 = vcmp.lt.s32.totalorder %v115, 7
    %117 = vst.msk [vmem:[%s104] sm:$0xff] %vm116, %v113
    %s118 = scalar_lea.vmem [#allocation1], 32
    %s119 = scalar_lea.vmem [#allocation0], 64
    %s120 = scalar_lea.vmem %s119, 7 [#allocation0]
    %v121 = vld [vmem:[%s120] ss:$-1 sm:$0xff]
    %v122 = vrot.slane %v121, 1
    %123 = vst [vmem:[%s118] sm:$0xff] %v122
    %s124 = scalar_lea.vmem %s119, 8 [#allocation0]
    %s125 = scalar_lea.vmem %s124, 7 [#allocation0]
    %v126 = vld [vmem:[%s125] ss:$-1 sm:$0xff]
    %v127 = vrot.slane %v126, 1
    %v128 = vlaneseq
    %v129 = vshrl.u32 %v128, 7
    %vm130 = vcmp.lt.s32.totalorder %v129, 7
    %131 = vst.msk [vmem:[%s118] sm:$0xff] %vm130, %v127
    %s132 = scalar_lea.vmem [#allocation1], 40
    %s133 = scalar_lea.vmem [#allocation0], 80
    %s134 = scalar_lea.vmem %s133, 7 [#allocation0]
    %v135 = vld [vmem:[%s134] ss:$-1 sm:$0xff]
    %v136 = vrot.slane %v135, 1
    %137 = vst [vmem:[%s132] sm:$0xff] %v136
    %s138 = scalar_lea.vmem %s133, 8 [#allocation0]
    %s139 = scalar_lea.vmem %s138, 7 [#allocation0]
    %v140 = vld [vmem:[%s139] ss:$-1 sm:$0xff]
    %v141 = vrot.slane %v140, 1
    %v142 = vlaneseq
    %v143 = vshrl.u32 %v142, 7
    %vm144 = vcmp.lt.s32.totalorder %v143, 7
    %145 = vst.msk [vmem:[%s132] sm:$0xff] %vm144, %v141
    %s146 = scalar_lea.vmem [#allocation1], 48
    %s147 = scalar_lea.vmem [#allocation0], 96
    %s148 = scalar_lea.vmem %s147, 7 [#allocation0]
    %v149 = vld [vmem:[%s148] ss:$-1 sm:$0xff]
    %v150 = vrot.slane %v149, 1
    %151 = vst [vmem:[%s146] sm:$0xff] %v150
    %s152 = scalar_lea.vmem %s147, 8 [#allocation0]
    %s153 = scalar_lea.vmem %s152, 7 [#allocation0]
    %v154 = vld [vmem:[%s153] ss:$-1 sm:$0xff]
    %v155 = vrot.slane %v154, 1
    %v156 = vlaneseq
    %v157 = vshrl.u32 %v156, 7
    %vm158 = vcmp.lt.s32.totalorder %v157, 7
    %159 = vst.msk [vmem:[%s146] sm:$0xff] %vm158, %v155
    %s160 = scalar_lea.vmem [#allocation1], 56
    %s161 = scalar_lea.vmem [#allocation0], 112
    %s162 = scalar_lea.vmem %s161, 7 [#allocation0]
    %v163 = vld [vmem:[%s162] ss:$-1 sm:$0xff]
    %v164 = vrot.slane %v163, 1
    %165 = vst [vmem:[%s160] sm:$0xff] %v164
    %s166 = scalar_lea.vmem %s161, 8 [#allocation0]
    %s167 = scalar_lea.vmem %s166, 7 [#allocation0]
    %v168 = vld [vmem:[%s167] ss:$-1 sm:$0xff]
    %v169 = vrot.slane %v168, 1
    %v170 = vlaneseq
    %v171 = vshrl.u32 %v170, 7
    %vm172 = vcmp.lt.s32.totalorder %v171, 7
    %173 = vst.msk [vmem:[%s160] sm:$0xff] %vm172, %v169
    // Predicated region
    $region36: #{reverse.0} parent=1 // pred_check
      _
    $region37: #{reverse.0} parent=1 // pred_check_branch
      %175 = sbr.rel (0) target = $region39
    $region38: #{reverse.0} parent=1 // pred_region
      // Predicated region
      $region40: #{reverse.0} parent=38 // pred_check
        _
      $region41: #{reverse.0} parent=38 // pred_check_branch
        %177 = sbr.rel (0) target = $region43
      $region42: #{reverse.0} parent=38 // pred_region
        // Predicated region
        $region55: #{reverse.0} parent=42 // pred_check
          _
        $region56: #{reverse.0} parent=42 // pred_check_branch
          %207 = sbr.rel (0) target = $region58
        $region57: #{reverse.0} parent=42 // pred_region
          loop: start=0, step=1, limit=1
          $region59: #{reverse.0} parent=57 // loop_pre_header
            _
          $region60: #{reverse.0} parent=57 // loop_header
            %s209 = sphi 0, %s213
            %p210 = scmp.ge.s32.totalorder %s209, 1
            %s214 = sphi [#allocation1], [#allocation1]
            %s215 = sphi %s1, %s1
          $region61: #{reverse.0} parent=57 // loop_header_branch
            %212 = sbr.rel (%p210) target = $region65
          $region62: #{reverse.0} parent=57 // loop_body
            %v216 = vld [vmem:[%s214] sm:$0xff]
            %217 = vst [vmem:[%s215] sm:$0xff] %v216
            %v218 = vld [vmem:[%s214 + $0x8] sm:$0xff]
            %219 = vst [vmem:[%s215 + $0x8] sm:$0xff] %v218
            %v220 = vld [vmem:[%s214 + $0x10] sm:$0xff]
            %221 = vst [vmem:[%s215 + $0x10] sm:$0xff] %v220
            %v222 = vld [vmem:[%s214 + $0x18] sm:$0xff]
            %223 = vst [vmem:[%s215 + $0x18] sm:$0xff] %v222
            %v224 = vld [vmem:[%s214 + $0x20] sm:$0xff]
            %225 = vst [vmem:[%s215 + $0x20] sm:$0xff] %v224
            %v226 = vld [vmem:[%s214 + $0x28] sm:$0xff]
            %227 = vst [vmem:[%s215 + $0x28] sm:$0xff] %v226
            %v228 = vld [vmem:[%s214 + $0x30] sm:$0xff]
            %229 = vst [vmem:[%s215 + $0x30] sm:$0xff] %v228
            %v230 = vld [vmem:[%s214 + $0x38] sm:$0xff]
            %231 = vst [vmem:[%s215 + $0x38] sm:$0xff] %v230
          $region63: #{reverse.0} parent=57 // loop_footer
            %s213 = sadd.s32 1, %s209
          $region64: #{reverse.0} parent=57 // loop_footer_branch
            %208 = sbr.rel target = $region60
          $region65: #{reverse.0} parent=57 // loop_exit
            _
        $region58: #{reverse.0} parent=42 // pred_fallthru
          _
        // Predicated region
        $region66: #{reverse.0} parent=42 // pred_check
          _
        $region67: #{reverse.0} parent=42 // pred_check_branch
          %233 = sbr.rel target = $region69
        $region68: #{reverse.0} parent=42 // pred_region
          _
        $region69: #{reverse.0} parent=42 // pred_fallthru
          _
      $region43: #{reverse.0} parent=38 // pred_fallthru
        _
      // Predicated region
      $region44: #{reverse.0} parent=38 // pred_check
        _
      $region45: #{reverse.0} parent=38 // pred_check_branch
        %179 = sbr.rel target = $region47
      $region46: #{reverse.0} parent=38 // pred_region
        %s181 = ssub.s32 256, 1
        loop: start=0, step=1, limit=1
        $region48: #{reverse.0} parent=46 // loop_pre_header
          _
        $region49: #{reverse.0} parent=46 // loop_header
          %s183 = sphi 0, %s187
          %p184 = scmp.ge.s32.totalorder %s183, 1
          %s188 = sphi [#allocation1], [#allocation1]
          %s189 = sphi %s1, %s1
        $region50: #{reverse.0} parent=46 // loop_header_branch
          %186 = sbr.rel (%p184) target = $region54
        $region51: #{reverse.0} parent=46 // loop_body
          %v190 = vld [vmem:[%s188] sm:%s181]
          %191 = vst [vmem:[%s189] sm:%s181] %v190
          %v192 = vld [vmem:[%s188 + $0x8] sm:%s181]
          %193 = vst [vmem:[%s189 + $0x8] sm:%s181] %v192
          %v194 = vld [vmem:[%s188 + $0x10] sm:%s181]
          %195 = vst [vmem:[%s189 + $0x10] sm:%s181] %v194
          %v196 = vld [vmem:[%s188 + $0x18] sm:%s181]
          %197 = vst [vmem:[%s189 + $0x18] sm:%s181] %v196
          %v198 = vld [vmem:[%s188 + $0x20] sm:%s181]
          %199 = vst [vmem:[%s189 + $0x20] sm:%s181] %v198
          %v200 = vld [vmem:[%s188 + $0x28] sm:%s181]
          %201 = vst [vmem:[%s189 + $0x28] sm:%s181] %v200
          %v202 = vld [vmem:[%s188 + $0x30] sm:%s181]
          %203 = vst [vmem:[%s189 + $0x30] sm:%s181] %v202
          %v204 = vld [vmem:[%s188 + $0x38] sm:%s181]
          %205 = vst [vmem:[%s189 + $0x38] sm:%s181] %v204
        $region52: #{reverse.0} parent=46 // loop_footer
          %s187 = sadd.s32 1, %s183
        $region53: #{reverse.0} parent=46 // loop_footer_branch
          %182 = sbr.rel target = $region49
        $region54: #{reverse.0} parent=46 // loop_exit
          _
      $region47: #{reverse.0} parent=38 // pred_fallthru
        _
    $region39: #{reverse.0} parent=1 // pred_fallthru
      _
    %234 = vnop

// kernel: spectral_conv2d_forward.2
$region0: #{spectral_conv2d_forward.2}
  #allocation0 [shape = 'u32[]', space=smem, size = 0x4, offset = 0x4, fixed_abs, tag = 'smem constant byte address 0x4 - core index']
  #allocation1 [shape = 'u32[144,128]{1,0:T(1,128)}', space=vmem, size = 0x12000, scoped, tag = 'internal scratch']
  %s0 = inlined_call_operand.vmem [shape: f32[8,128], index: 0, kind: input, shape index: {}]
  %s1 = inlined_call_operand.vmem [shape: f32[8,128], index: 1, kind: input, shape index: {}]
  %s2 = inlined_call_operand.vmem [shape: f32[16,128], index: 2, kind: input, shape index: {}]
  %s3 = inlined_call_operand.vmem [shape: f32[16,128], index: 3, kind: input, shape index: {}]
  %s4 = inlined_call_operand.vmem [shape: f32[8,128], index: 4, kind: output, shape index: {0}]
  %s5 = inlined_call_operand.vmem [shape: f32[8,128], index: 5, kind: output, shape index: {1}]
  %6 = xla_tuple %s4, %s5
  %s7 = sld [smem:[#allocation0]]
  $region34: #{spectral_conv2d_forward.2} parent=0
    _
  %s9 = ssub.s32 1, %s7
  %s10 = scalar_select 0, %s9, %s7
  // Predicated region
  $region2: #{spectral_conv2d_forward.2} parent=0 // pred_check
    _
  $region3: #{spectral_conv2d_forward.2} parent=0 // pred_check_branch
    %12 = sbr.rel (0) target = $region5
  $region4: #{spectral_conv2d_forward.2} parent=0 // pred_region
    _
  $region5: #{spectral_conv2d_forward.2} parent=0 // pred_fallthru
    _
  // Predicated region
  $region6: #{spectral_conv2d_forward.2} parent=0 // pred_check
    _
  $region7: #{spectral_conv2d_forward.2} parent=0 // pred_check_branch
    %14 = sbr.rel (0) target = $region9
  $region8: #{spectral_conv2d_forward.2} parent=0 // pred_region
    _
  $region9: #{spectral_conv2d_forward.2} parent=0 // pred_fallthru
    _
  // Predicated region
  $region10: #{spectral_conv2d_forward.2} parent=0 // pred_check
    _
  $region11: #{spectral_conv2d_forward.2} parent=0 // pred_check_branch
    %16 = sbr.rel (0) target = $region13
  $region12: #{spectral_conv2d_forward.2} parent=0 // pred_region
    _
  $region13: #{spectral_conv2d_forward.2} parent=0 // pred_fallthru
    _
  // Predicated region
  $region14: #{spectral_conv2d_forward.2} parent=0 // pred_check
    _
  $region15: #{spectral_conv2d_forward.2} parent=0 // pred_check_branch
    %18 = sbr.rel (0) target = $region17
  $region16: #{spectral_conv2d_forward.2} parent=0 // pred_region
    _
  $region17: #{spectral_conv2d_forward.2} parent=0 // pred_fallthru
    _
  %v19 = vld [vmem:[%s0] sm:$0x1]
  %v20 = vld [vmem:[%s1] sm:$0x1]
  %v21 = vld [vmem:[%s2] sm:$0xf]
  %v22 = vld [vmem:[%s3] sm:$0xf]
  %v23 = vlaneseq
  %v24 = vshrl.u32 %v23, 7
  %v25 = vsub.s32 0, %v24
  %v26 = vrot.slane %v19, %v25
  %v27 = vmul.f32 %v26, %v21
  %v28 = vlaneseq
  %v29 = vshrl.u32 %v28, 7
  %v30 = vsub.s32 0, %v29
  %v31 = vrot.slane %v20, %v30
  %v32 = vmul.f32 %v31, %v22
  %v33 = vsub.f32 %v27, %v32
  %v34 = vmul.f32 %v31, %v21
  %v35 = vmul.f32 %v26, %v22
  %v36 = vadd.f32 %v34, %v35
  %v37 = vld [vmem:[%s0 + $0x1] sm:$0x1]
  %v38 = vld [vmem:[%s1 + $0x1] sm:$0x1]
  %v39 = vld [vmem:[%s2 + $0x4] sm:$0xf]
  %v40 = vld [vmem:[%s3 + $0x4] sm:$0xf]
  %v41 = vlaneseq
  %v42 = vshrl.u32 %v41, 7
  %v43 = vsub.s32 0, %v42
  %v44 = vrot.slane %v37, %v43
  %v45 = vmul.f32 %v44, %v39
  %v46 = vlaneseq
  %v47 = vshrl.u32 %v46, 7
  %v48 = vsub.s32 0, %v47
  %v49 = vrot.slane %v38, %v48
  %v50 = vmul.f32 %v49, %v40
  %v51 = vsub.f32 %v45, %v50
  %v52 = vmul.f32 %v49, %v39
  %v53 = vmul.f32 %v44, %v40
  %v54 = vadd.f32 %v52, %v53
  %v55 = vadd.f32 %v33, %v51
  %v56 = vadd.f32 %v36, %v54
  %v57 = vld [vmem:[%s0 + $0x2] sm:$0x1]
  %v58 = vld [vmem:[%s1 + $0x2] sm:$0x1]
  %v59 = vld [vmem:[%s2 + $0x8] sm:$0xf]
  %v60 = vld [vmem:[%s3 + $0x8] sm:$0xf]
  %v61 = vlaneseq
  %v62 = vshrl.u32 %v61, 7
  %v63 = vsub.s32 0, %v62
  %v64 = vrot.slane %v57, %v63
  %v65 = vmul.f32 %v64, %v59
  %v66 = vlaneseq
  %v67 = vshrl.u32 %v66, 7
  %v68 = vsub.s32 0, %v67
  %v69 = vrot.slane %v58, %v68
  %v70 = vmul.f32 %v69, %v60
  %v71 = vsub.f32 %v65, %v70
  %v72 = vmul.f32 %v69, %v59
  %v73 = vmul.f32 %v64, %v60
  %v74 = vadd.f32 %v72, %v73
  %v75 = vadd.f32 %v55, %v71
  %v76 = vadd.f32 %v56, %v74
  %v77 = vld [vmem:[%s0 + $0x3] sm:$0x1]
  %v78 = vld [vmem:[%s1 + $0x3] sm:$0x1]
  %v79 = vld [vmem:[%s2 + $0xc] sm:$0xf]
  %v80 = vld [vmem:[%s3 + $0xc] sm:$0xf]
  %v81 = vlaneseq
  %v82 = vshrl.u32 %v81, 7
  %v83 = vsub.s32 0, %v82
  %v84 = vrot.slane %v77, %v83
  %v85 = vmul.f32 %v84, %v79
  %v86 = vlaneseq
  %v87 = vshrl.u32 %v86, 7
  %v88 = vsub.s32 0, %v87
  %v89 = vrot.slane %v78, %v88
  %v90 = vmul.f32 %v89, %v80
  %v91 = vsub.f32 %v85, %v90
  %v92 = vmul.f32 %v89, %v79
  %v93 = vmul.f32 %v84, %v80
  %v94 = vadd.f32 %v92, %v93
  %v95 = vadd.f32 %v75, %v91
  %v96 = vadd.f32 %v76, %v94
  %97 = vst [vmem:[%s4] sm:$0xf] %v95
  %98 = vst [vmem:[%s5] sm:$0xf] %v96
  %v99 = vld [vmem:[%s0 + $0x4] sm:$0x1]
  %v100 = vld [vmem:[%s1 + $0x4] sm:$0x1]
  %v101 = vld [vmem:[%s2] sm:$0xf]
  %v102 = vld [vmem:[%s3] sm:$0xf]
  %v103 = vlaneseq
  %v104 = vshrl.u32 %v103, 7
  %v105 = vsub.s32 0, %v104
  %v106 = vrot.slane %v99, %v105
  %v107 = vmul.f32 %v106, %v101
  %v108 = vlaneseq
  %v109 = vshrl.u32 %v108, 7
  %v110 = vsub.s32 0, %v109
  %v111 = vrot.slane %v100, %v110
  %v112 = vmul.f32 %v111, %v102
  %v113 = vsub.f32 %v107, %v112
  %v114 = vmul.f32 %v111, %v101
  %v115 = vmul.f32 %v106, %v102
  %v116 = vadd.f32 %v114, %v115
  %v117 = vld [vmem:[%s0 + $0x5] sm:$0x1]
  %v118 = vld [vmem:[%s1 + $0x5] sm:$0x1]
  %v119 = vld [vmem:[%s2 + $0x4] sm:$0xf]
  %v120 = vld [vmem:[%s3 + $0x4] sm:$0xf]
  %v121 = vlaneseq
  %v122 = vshrl.u32 %v121, 7
  %v123 = vsub.s32 0, %v122
  %v124 = vrot.slane %v117, %v123
  %v125 = vmul.f32 %v124, %v119
  %v126 = vlaneseq
  %v127 = vshrl.u32 %v126, 7
  %v128 = vsub.s32 0, %v127
  %v129 = vrot.slane %v118, %v128
  %v130 = vmul.f32 %v129, %v120
  %v131 = vsub.f32 %v125, %v130
  %v132 = vmul.f32 %v129, %v119
  %v133 = vmul.f32 %v124, %v120
  %v134 = vadd.f32 %v132, %v133
  %v135 = vadd.f32 %v113, %v131
  %v136 = vadd.f32 %v116, %v134
  %v137 = vld [vmem:[%s0 + $0x6] sm:$0x1]
  %v138 = vld [vmem:[%s1 + $0x6] sm:$0x1]
  %v139 = vld [vmem:[%s2 + $0x8] sm:$0xf]
  %v140 = vld [vmem:[%s3 + $0x8] sm:$0xf]
  %v141 = vlaneseq
  %v142 = vshrl.u32 %v141, 7
  %v143 = vsub.s32 0, %v142
  %v144 = vrot.slane %v137, %v143
  %v145 = vmul.f32 %v144, %v139
  %v146 = vlaneseq
  %v147 = vshrl.u32 %v146, 7
  %v148 = vsub.s32 0, %v147
  %v149 = vrot.slane %v138, %v148
  %v150 = vmul.f32 %v149, %v140
  %v151 = vsub.f32 %v145, %v150
  %v152 = vmul.f32 %v149, %v139
  %v153 = vmul.f32 %v144, %v140
  %v154 = vadd.f32 %v152, %v153
  %v155 = vadd.f32 %v135, %v151
  %v156 = vadd.f32 %v136, %v154
  %v157 = vld [vmem:[%s0 + $0x7] sm:$0x1]
  %v158 = vld [vmem:[%s1 + $0x7] sm:$0x1]
  %v159 = vld [vmem:[%s2 + $0xc] sm:$0xf]
  %v160 = vld [vmem:[%s3 + $0xc] sm:$0xf]
  %v161 = vlaneseq
  %v162 = vshrl.u32 %v161, 7
  %v163 = vsub.s32 0, %v162
  %v164 = vrot.slane %v157, %v163
  %v165 = vmul.f32 %v164, %v159
  %v166 = vlaneseq
  %v167 = vshrl.u32 %v166, 7
  %v168 = vsub.s32 0, %v167
  %v169 = vrot.slane %v158, %v168
  %v170 = vmul.f32 %v169, %v160
  %v171 = vsub.f32 %v165, %v170
  %v172 = vmul.f32 %v169, %v159
  %v173 = vmul.f32 %v164, %v160
  %v174 = vadd.f32 %v172, %v173
  %v175 = vadd.f32 %v155, %v171
  %v176 = vadd.f32 %v156, %v174
  %177 = vst [vmem:[%s4 + $0x4] sm:$0xf] %v175
  %178 = vst [vmem:[%s5 + $0x4] sm:$0xf] %v176
  // Predicated region
  $region18: #{spectral_conv2d_forward.2} parent=0 // pred_check
    _
  $region19: #{spectral_conv2d_forward.2} parent=0 // pred_check_branch
    %180 = sbr.rel (0) target = $region21
  $region20: #{spectral_conv2d_forward.2} parent=0 // pred_region
    _
  $region21: #{spectral_conv2d_forward.2} parent=0 // pred_fallthru
    _
  // Predicated region
  $region22: #{spectral_conv2d_forward.2} parent=0 // pred_check
    _
  $region23: #{spectral_conv2d_forward.2} parent=0 // pred_check_branch
    %182 = sbr.rel (0) target = $region25
  $region24: #{spectral_conv2d_forward.2} parent=0 // pred_region
    _
  $region25: #{spectral_conv2d_forward.2} parent=0 // pred_fallthru
    _
  // Predicated region
  $region26: #{spectral_conv2d_forward.2} parent=0 // pred_check
    _
  $region27: #{spectral_conv2d_forward.2} parent=0 // pred_check_branch
    %184 = sbr.rel (0) target = $region29
  $region28: #{spectral_conv2d_forward.2} parent=0 // pred_region
    _
  $region29: #{spectral_conv2d_forward.2} parent=0 // pred_fallthru
    _
  // Predicated region
  $region30: #{spectral_conv2d_forward.2} parent=0 // pred_check
    _
  $region31: #{spectral_conv2d_forward.2} parent=0 // pred_check_branch
    %186 = sbr.rel (0) target = $region33
  $region32: #{spectral_conv2d_forward.2} parent=0 // pred_region
    _
  $region33: #{spectral_conv2d_forward.2} parent=0 // pred_fallthru
    _

// kernel: spectral_conv2d_forward.3
$region0: #{spectral_conv2d_forward.3}
  #allocation0 [shape = 'u32[]', space=smem, size = 0x4, offset = 0x4, fixed_abs, tag = 'smem constant byte address 0x4 - core index']
  #allocation1 [shape = 'u32[144,128]{1,0:T(1,128)}', space=vmem, size = 0x12000, scoped, tag = 'internal scratch']
  %s0 = inlined_call_operand.vmem [shape: f32[4,4], index: 0, kind: input, shape index: {}]
  %s1 = inlined_call_operand.vmem [shape: f32[2,4,256], index: 1, kind: input, shape index: {}]
  %s2 = inlined_call_operand.vmem [shape: f32[2,4,256], index: 2, kind: input, shape index: {}]
  %s3 = inlined_call_operand.vmem [shape: f32[2,4,256], index: 3, kind: output, shape index: {}]
  %s4 = sld [smem:[#allocation0]]
  $region45: #{spectral_conv2d_forward.3} parent=0
    _
  %s6 = ssub.s32 1, %s4
  %s7 = scalar_select 0, %s6, %s4
  loop: start=0, step=1, limit=4
  $region2: #{spectral_conv2d_forward.3} parent=0 // loop_pre_header
    _
  $region3: #{spectral_conv2d_forward.3} parent=0 // loop_header
    %s9 = sphi 0, %s13
    %p10 = scmp.ge.s32.totalorder %s9, 4
    %s17 = sphi 0, %s17
    %s19 = sphi 0, %s17
    %s20 = sphi 0, %s19
    %s34 = sphi 0, %s20
    %s40 = sphi 0, %s42
    %s43 = sphi 0, %s40
    %s44 = sphi 0, %s43
    %s60 = sphi 0, %s44
    %s66 = sphi 0, %s68
    %s69 = sphi 0, %s66
    %s70 = sphi 0, %s69
    %s86 = sphi 0, %s70
    %s92 = sphi 0, %s94
    %s95 = sphi 0, %s92
    %s96 = sphi 0, %s95
    %s112 = sphi 0, %s96
  $region4: #{spectral_conv2d_forward.3} parent=0 // loop_header_branch
    %12 = sbr.rel (%p10) target = $region8
  $region5: #{spectral_conv2d_forward.3} parent=0 // loop_body
    %s14 = ssub.s32 %s9, 1
    %s15 = ssub.s32 %s9, 2
    %s16 = sadd.s32 %s9, 1
    %s18 = sadd.s32 %s17, 1
    %p21 = scmp.eq.s32.totalorder %s9, 1
    %p22 = scmp.ne.s32.totalorder %s17, %s19
    %p23 = scmp.eq.s32.totalorder %s9, 0
    %p24 = por %p22, %p23
    %p25 = scmp.ne.s32.totalorder %s17, %s19
    %p26 = scmp.eq.s32.totalorder %s14, 1
    %p27 = por %p25, %p26
    %p28 = scmp.ne.s32.totalorder %s19, %s20
    %p29 = scmp.eq.s32.totalorder %s14, 0
    %p30 = por %p28, %p29
    %p31 = scmp.ne.s32.totalorder %s19, %s20
    %p32 = scmp.eq.s32.totalorder %s15, 1
    %p33 = por %p31, %p32
    %p35 = scmp.ne.s32.totalorder %s20, %s34
    %p36 = scmp.eq.s32.totalorder %s15, 0
    %p37 = por %p35, %p36
    %s38 = ssub.s32 %s9, %s16
    %p39 = scmp.eq.s32.totalorder %s38, 0
    %s41 = sadd.s32 %s40, 1
    %s42 = scalar_select %p39, %s40, %s41
    %p45 = pneg %p39
    %p46 = scmp.eq.s32.totalorder %s9, 1
    %p47 = por %p45, %p46
    %p48 = scmp.ne.s32.totalorder %s40, %s43
    %p49 = scmp.eq.s32.totalorder %s9, 0
    %p50 = por %p48, %p49
    %p51 = scmp.ne.s32.totalorder %s40, %s43
    %p52 = scmp.eq.s32.totalorder %s14, 1
    %p53 = por %p51, %p52
    %p54 = scmp.ne.s32.totalorder %s43, %s44
    %p55 = scmp.eq.s32.totalorder %s14, 0
    %p56 = por %p54, %p55
    %p57 = scmp.ne.s32.totalorder %s43, %s44
    %p58 = scmp.eq.s32.totalorder %s15, 1
    %p59 = por %p57, %p58
    %p61 = scmp.ne.s32.totalorder %s44, %s60
    %p62 = scmp.eq.s32.totalorder %s15, 0
    %p63 = por %p61, %p62
    %s64 = ssub.s32 %s9, %s16
    %p65 = scmp.eq.s32.totalorder %s64, 0
    %s67 = sadd.s32 %s66, 1
    %s68 = scalar_select %p65, %s66, %s67
    %p71 = pneg %p65
    %p72 = scmp.eq.s32.totalorder %s9, 1
    %p73 = por %p71, %p72
    %p74 = scmp.ne.s32.totalorder %s66, %s69
    %p75 = scmp.eq.s32.totalorder %s9, 0
    %p76 = por %p74, %p75
    %p77 = scmp.ne.s32.totalorder %s66, %s69
    %p78 = scmp.eq.s32.totalorder %s14, 1
    %p79 = por %p77, %p78
    %p80 = scmp.ne.s32.totalorder %s69, %s70
    %p81 = scmp.eq.s32.totalorder %s14, 0
    %p82 = por %p80, %p81
    %p83 = scmp.ne.s32.totalorder %s69, %s70
    %p84 = scmp.eq.s32.totalorder %s15, 1
    %p85 = por %p83, %p84
    %p87 = scmp.ne.s32.totalorder %s70, %s86
    %p88 = scmp.eq.s32.totalorder %s15, 0
    %p89 = por %p87, %p88
    %s90 = ssub.s32 %s9, %s16
    %p91 = scmp.eq.s32.totalorder %s90, 0
    %s93 = sadd.s32 %s92, 1
    %s94 = scalar_select %p91, %s92, %s93
    %p97 = pneg %p91
    %p98 = scmp.eq.s32.totalorder %s9, 1
    %p99 = por %p97, %p98
    %p100 = scmp.ne.s32.totalorder %s92, %s95
    %p101 = scmp.eq.s32.totalorder %s9, 0
    %p102 = por %p100, %p101
    %p103 = scmp.ne.s32.totalorder %s92, %s95
    %p104 = scmp.eq.s32.totalorder %s14, 1
    %p105 = por %p103, %p104
    %p106 = scmp.ne.s32.totalorder %s95, %s96
    %p107 = scmp.eq.s32.totalorder %s14, 0
    %p108 = por %p106, %p107
    %p109 = scmp.ne.s32.totalorder %s95, %s96
    %p110 = scmp.eq.s32.totalorder %s15, 1
    %p111 = por %p109, %p110
    %p113 = scmp.ne.s32.totalorder %s96, %s112
    %p114 = scmp.eq.s32.totalorder %s15, 0
    %p115 = por %p113, %p114
    %p116 = scmp.le.s32.totalorder 1, %s9
    %p117 = scmp.lt.s32.totalorder %s9, 3
    %p118 = pnand %p116, %p117
    %p119 = pneg %p118
    // Predicated region
    $region9: #{spectral_conv2d_forward.3} parent=5 // pred_check
      _
    $region10: #{spectral_conv2d_forward.3} parent=5 // pred_check_branch
      %121 = sbr.rel (%p118) target = $region12
    $region11: #{spectral_conv2d_forward.3} parent=5 // pred_region
      %s122 = ssub.s32 %s9, 1
      // Predicated region
      $region13: #{spectral_conv2d_forward.3} parent=11 // pred_check
        %p123 = pneg %p30
      $region14: #{spectral_conv2d_forward.3} parent=11 // pred_check_branch
        %125 = sbr.rel (%p123) target = $region16
      $region15: #{spectral_conv2d_forward.3} parent=11 // pred_region
        _
      $region16: #{spectral_conv2d_forward.3} parent=11 // pred_fallthru
        _
    $region12: #{spectral_conv2d_forward.3} parent=5 // pred_fallthru
      _
    %p126 = scmp.lt.s32.totalorder %s9, 2
    // Predicated region
    $region17: #{spectral_conv2d_forward.3} parent=5 // pred_check
      %p127 = pneg %p126
    $region18: #{spectral_conv2d_forward.3} parent=5 // pred_check_branch
      %129 = sbr.rel (%p127) target = $region20
    $region19: #{spectral_conv2d_forward.3} parent=5 // pred_region
      // Predicated region
      $region21: #{spectral_conv2d_forward.3} parent=19 // pred_check
        %p130 = pneg %p50
      $region22: #{spectral_conv2d_forward.3} parent=19 // pred_check_branch
        %132 = sbr.rel (%p130) target = $region24
      $region23: #{spectral_conv2d_forward.3} parent=19 // pred_region
        %p133 = scmp.lt.s32.totalorder %s9, 1
        %s134 = scalar_select %p133, %s9, 1
        %s135 = smul.addr %s134, 2
        %s136 = smul.addr %s135, 4
        %s137 = scalar_lea.vmem %s1, %s136
      $region24: #{spectral_conv2d_forward.3} parent=19 // pred_fallthru
        _
      // Predicated region
      $region25: #{spectral_conv2d_forward.3} parent=19 // pred_check
        %p138 = pneg %p76
      $region26: #{spectral_conv2d_forward.3} parent=19 // pred_check_branch
        %140 = sbr.rel (%p138) target = $region28
      $region27: #{spectral_conv2d_forward.3} parent=19 // pred_region
        %p141 = scmp.lt.s32.totalorder %s9, 1
        %s142 = scalar_select %p141, %s9, 1
        %s143 = smul.addr %s142, 2
        %s144 = smul.addr %s143, 4
        %s145 = scalar_lea.vmem %s2, %s144
      $region28: #{spectral_conv2d_forward.3} parent=19 // pred_fallthru
        _
    $region20: #{spectral_conv2d_forward.3} parent=5 // pred_fallthru
      _
    %p146 = scmp.le.s32.totalorder 1, %s9
    %p147 = scmp.lt.s32.totalorder %s9, 3
    %p148 = pnand %p146, %p147
    %p149 = pneg %p148
    // Predicated region
    $region29: #{spectral_conv2d_forward.3} parent=5 // pred_check
      _
    $region30: #{spectral_conv2d_forward.3} parent=5 // pred_check_branch
      %151 = sbr.rel (%p148) target = $region32
    $region31: #{spectral_conv2d_forward.3} parent=5 // pred_region
      %s152 = ssub.s32 %s9, 1
      %p153 = pneg %p30
      %p154 = pneg %p27
      %p155 = scmp.lt.s32.totalorder %s14, 1
      %s156 = scalar_select %p155, %s14, 1
      %s157 = smul.addr %s156, 2
      %s158 = smul.addr %s157, 4
      %s159 = scalar_lea.vmem %s1, %s158
      %p160 = pneg %p56
      %p161 = pneg %p53
      %p162 = scmp.lt.s32.totalorder %s14, 1
      %s163 = scalar_select %p162, %s14, 1
      %s164 = smul.addr %s163, 2
      %s165 = smul.addr %s164, 4
      %s166 = scalar_lea.vmem %s2, %s165
      %p167 = pneg %p82
      %p168 = pneg %p79
      %p169 = pneg %p108
      %p170 = pneg %p105
      %p171 = scmp.lt.s32.totalorder %s14, 1
      %s172 = scalar_select %p171, %s14, 1
      %s173 = smul.addr %s172, 2
      %s174 = smul.addr %s173, 4
      %s175 = scalar_lea.vmem %s3, %s174
      %p176 = scmp.lt.s32.totalorder %s14, 1
      %s177 = scalar_select %p176, %s14, 1
      %s178 = smul.addr %s177, 2
      %s179 = smul.addr %s178, 4
      %s180 = scalar_lea.vmem %s1, %s179
      %p181 = scmp.lt.s32.totalorder %s14, 1
      %s182 = scalar_select %p181, %s14, 1
      %s183 = smul.addr %s182, 2
      %s184 = smul.addr %s183, 4
      %s185 = scalar_lea.vmem %s2, %s184
      %p186 = scmp.lt.s32.totalorder %s14, 1
      %s187 = scalar_select %p186, %s14, 1
      %s188 = smul.addr %s187, 2
      %s189 = smul.addr %s188, 4
      %s190 = scalar_lea.vmem %s3, %s189
      %v191 = vld [vmem:[%s0] sm:$0xf]
      %v192 = vld [vmem:[%s180] sm:$0xff]
      %v194 = vcombine.high %v192, %v192
      %vm195 = vcmask 31744
      %v197 = vsel %vm195, %v191, 0
      %vm199 = vcmask 1043456
      %v200 = vsel %vm199, %v192, 0
      %v202 = vsel %vm199, %v194, 0
      %204 = vmatprep.subr.mxu0 0.0
      %205 = vmatpush1.msra.mxu0 0.0
      %206 = vmatprep.subr.mxu0 0.0
      %207 = vmatpush1.msra.mxu0 0.0
      %208 = vmatprep.subr.mxu0 0.0
      %209 = vmatpush1.msra.mxu0 0.0
      %210 = vmatprep.subr.mxu0 0.0
      %211 = vmatpush1.msra.mxu0 0.0
      %212 = vmatprep.subr.mxu0 0.0
      %213 = vmatpush1.msra.mxu0 0.0
      %214 = vmatprep.subr.mxu0 0.0
      %215 = vmatpush1.msra.mxu0 0.0
      %216 = vmatprep.subr.mxu0 0.0
      %217 = vmatpush1.msra.mxu0 0.0
      %218 = vmatprep.subr.mxu0 0.0
      %219 = vmatpush1.msra.mxu0 0.0
      %220 = vmatprep.subr.mxu0 0.0
      %221 = vmatpush1.msra.mxu0 0.0
      %222 = vmatprep.subr.mxu0 0.0
      %223 = vmatpush1.msra.mxu0 0.0
      %224 = vmatprep.subr.mxu0 0.0
      %225 = vmatpush1.msra.mxu0 0.0
      %226 = vmatprep.subr.mxu0 0.0
      %227 = vmatpush1.msra.mxu0 0.0
      %228 = vmatprep.subr.mxu0 0.0
      %229 = vmatpush1.msra.mxu0 0.0
      %230 = vmatprep.subr.mxu0 0.0
      %231 = vmatpush1.msra.mxu0 0.0
      %232 = vmatprep.subr.mxu0 0.0
      %233 = vmatpush1.msra.mxu0 0.0
      %234 = vmatprep.subr.mxu0 %v202
      %235 = vmatpush1.msra.mxu0 %v200
      %236 = vmatprep.subr.mxu0 0.0
      %237 = vmatpush2.msra.mxu0 0.0
      %238 = vmatprep.subr.mxu0 0.0
      %239 = vmatpush2.msra.mxu0 0.0
      %240 = vmatprep.subr.mxu0 0.0
      %241 = vmatpush2.msra.mxu0 0.0
      %242 = vmatprep.subr.mxu0 0.0
      %243 = vmatpush2.msra.mxu0 0.0
      %244 = vmatprep.subr.mxu0 0.0
      %245 = vmatpush2.msra.mxu0 0.0
      %246 = vmatprep.subr.mxu0 0.0
      %247 = vmatpush2.msra.mxu0 0.0
      %248 = vmatprep.subr.mxu0 0.0
      %249 = vmatpush2.msra.mxu0 0.0
      %250 = vmatprep.subr.mxu0 0.0
      %251 = vmatpush2.msra.mxu0 0.0
      %252 = vmatprep.subr.mxu0 0.0
      %253 = vmatpush2.msra.mxu0 0.0
      %254 = vmatprep.subr.mxu0 0.0
      %255 = vmatpush2.msra.mxu0 0.0
      %256 = vmatprep.subr.mxu0 0.0
      %257 = vmatpush2.msra.mxu0 0.0
      %258 = vmatprep.subr.mxu0 0.0
      %259 = vmatpush2.msra.mxu0 0.0
      %260 = vmatprep.subr.mxu0 0.0
      %261 = vmatpush2.msra.mxu0 0.0
      %262 = vmatprep.subr.mxu0 0.0
      %263 = vmatpush2.msra.mxu0 0.0
      %264 = vmatprep.subr.mxu0 0.0
      %265 = vmatpush2.msra.mxu0 0.0
      %266 = vmatprep.subr.mxu0 0.0
      %267 = vmatpush2.msra.mxu0 0.0
      %268 = vmatprep.mubr.f32.mxu0 0.0
      %269 = vmatmul.mubr.f32.gmra.mxu0 %v197
      %v270 = vpop.f32.mrf.mxu0
      %v271 = vadd.f32 0.0, %v270
      %v272 = vpop.f32.mrf.mxu0
      %v273 = vadd.f32 0.0, %v272
      %274 = vdwg.mxu0
      %v275 = vld [vmem:[%s185] sm:$0xff]
      %v278 = vcombine.low %v271, %v273
      %v280 = vadd.f32 %v275, %v278
      %v281 = vmax.f32 %v280, 0.0
      %282 = vst [vmem:[%s190] sm:$0xff] %v281
      %p283 = scmp.lt.s32.totalorder %s14, 1
      %s284 = scalar_select %p283, %s14, 1
      %s285 = smul.addr %s284, 2
      %s286 = smul.addr %s285, 4
      %s287 = scalar_lea.vmem %s3, %s286
      // Predicated region
      $region33: #{spectral_conv2d_forward.3} parent=31 // pred_check
        %p288 = pneg %p105
      $region34: #{spectral_conv2d_forward.3} parent=31 // pred_check_branch
        %290 = sbr.rel (%p288) target = $region36
      $region35: #{spectral_conv2d_forward.3} parent=31 // pred_region
        _
      $region36: #{spectral_conv2d_forward.3} parent=31 // pred_fallthru
        _
    $region32: #{spectral_conv2d_forward.3} parent=5 // pred_fallthru
      _
    %p291 = scmp.le.s32.totalorder 2, %s9
    // Predicated region
    $region37: #{spectral_conv2d_forward.3} parent=5 // pred_check
      %p292 = pneg %p291
    $region38: #{spectral_conv2d_forward.3} parent=5 // pred_check_branch
      %294 = sbr.rel (%p292) target = $region40
    $region39: #{spectral_conv2d_forward.3} parent=5 // pred_region
      %s295 = ssub.s32 %s9, 2
      // Predicated region
      $region41: #{spectral_conv2d_forward.3} parent=39 // pred_check
        %p296 = pneg %p111
      $region42: #{spectral_conv2d_forward.3} parent=39 // pred_check_branch
        %298 = sbr.rel (%p296) target = $region44
      $region43: #{spectral_conv2d_forward.3} parent=39 // pred_region
        %p299 = scmp.lt.s32.totalorder %s15, 1
        %s300 = scalar_select %p299, %s15, 1
        %s301 = smul.addr %s300, 2
        %s302 = smul.addr %s301, 4
        %s303 = scalar_lea.vmem %s3, %s302
      $region44: #{spectral_conv2d_forward.3} parent=39 // pred_fallthru
        _
    $region40: #{spectral_conv2d_forward.3} parent=5 // pred_fallthru
      _
  $region6: #{spectral_conv2d_forward.3} parent=0 // loop_footer
    %s13 = sadd.s32 1, %s9
  $region7: #{spectral_conv2d_forward.3} parent=0 // loop_footer_branch
    %8 = sbr.rel target = $region3
  $region8: #{spectral_conv2d_forward.3} parent=0 // loop_exit
    _

</llo_original>
